<compile_context>
chip_gen: v7x
topology: tpu7x:2x2x1
jax: 0.10.0
libtpu: 0.0.40
codegen_flags: <defaults>
</compile_context>

<pallas_src>
import functools

import numpy as np
import jax
import jax.numpy as jnp
from jax.experimental import pallas as pl
from jax.experimental.pallas import tpu as pltpu

# ---------------- model hyper-parameters (small, consistent with module) ----
B = 2        # batch
T = 8        # sequence length
K = 32       # feature dim  (k)
HEADS = 4    # heads        (h)
HIDDEN = 4 * K
LN_EPS = 1e-5
# Added to f32 scores (also bf16-representable, so safe if dtypes ever change).
MASK_VALUE = -1e30


# ---------------------------- Pallas kernel ---------------------------------
def transformer_block_kernel(
    x_ref,            # (R, K)  f32   R = B*T rows
    wqkv_ref,         # (K, 3*H*K) bf16, Q/K blocks pre-scaled by k**-0.25
    wu_ref,           # (H*K, K)   bf16
    w1_ref,           # (K, 4K)    bf16
    w2_ref,           # (4K, K)    bf16
    aux_ref,          # (8+R, 128) f32 packed: bu,g1,be1,b1,b2,g2,be2, pad, mask
    o_ref,            # (R, K)
    *, heads, use_mask,
):
    x = x_ref[...]                       # (R, K) f32 (kept f32 for residuals)
    r, k = x.shape
    hk = heads * k
    hidden = w1_ref.shape[-1]

    aux = aux_ref[...]                   # one small f32 load, static slices below
    bu  = aux[0:1, :k]
    g1  = aux[1:2, :k]
    be1 = aux[2:3, :k]
    b1  = aux[3:4, :hidden]
    b2  = aux[4:5, :k]
    g2  = aux[5:6, :k]
    be2 = aux[6:7, :k]
    neg_mask = aux[8:8 + r, :r] if use_mask else None   # block-diagonal additive mask

    # ---- fused Q/K/V projection: one MXU pass (bf16 operands, f32 accum) ----
    xb = x.astype(jnp.bfloat16)
    qkv = jnp.dot(xb, wqkv_ref[...], preferred_element_type=jnp.float32)  # (R, 3*H*K)

    dn_qk = (((1,), (1,)), ((), ()))     # contract feature dims: q @ k^T
    head_outs = []
    for h in range(heads):               # static unroll, H=4
        lo = h * k
        qh = qkv[:, lo:lo + k].astype(jnp.bfloat16)
        kh = qkv[:, hk + lo:hk + lo + k].astype(jnp.bfloat16)
        vh = qkv[:, 2 * hk + lo:2 * hk + lo + k].astype(jnp.bfloat16)

        s = jax.lax.dot_general(qh, kh, dn_qk,
                                preferred_element_type=jnp.float32)       # (R, R) f32
        if neg_mask is not None:
            s = s + neg_mask
        m = jnp.max(s, axis=-1, keepdims=True)
        e = jnp.exp(s - m)
        p = e * pl.reciprocal(jnp.sum(e, axis=-1, keepdims=True), approx=True)
        head_outs.append(jnp.dot(p.astype(jnp.bfloat16), vh,
                                 preferred_element_type=jnp.float32))      # (R, K)

    # ---- single unify-heads matmul over the full H*K contraction ----
    heads_cat = jnp.concatenate(head_outs, axis=-1).astype(jnp.bfloat16)   # (R, H*K)
    attended = jnp.dot(heads_cat, wu_ref[...],
                       preferred_element_type=jnp.float32) + bu            # (R, K)

    # ---- residual + LayerNorm 1 (f32 vector math) ----
    y = attended + x
    mu = jnp.mean(y, axis=-1, keepdims=True)
    var = jnp.mean((y - mu) ** 2, axis=-1, keepdims=True)
    y = (y - mu) * jax.lax.rsqrt(var + LN_EPS) * g1 + be1

    # ---- MLP: Linear(k, 4k) -> ReLU -> Linear(4k, k) ----
    hdn = jnp.dot(y.astype(jnp.bfloat16), w1_ref[...],
                  preferred_element_type=jnp.float32) + b1
    hdn = jnp.maximum(hdn, 0.0)
    ff = jnp.dot(hdn.astype(jnp.bfloat16), w2_ref[...],
                 preferred_element_type=jnp.float32) + b2

    # ---- residual + LayerNorm 2 (dropout is identity) ----
    z = ff + y
    mu2 = jnp.mean(z, axis=-1, keepdims=True)
    var2 = jnp.mean((z - mu2) ** 2, axis=-1, keepdims=True)
    z = (z - mu2) * jax.lax.rsqrt(var2 + LN_EPS) * g2 + be2

    o_ref[...] = z.astype(o_ref.dtype)


# ------------------------- one-time parameter prep ---------------------------
def prepare_params(p, batch, seq_len, heads=HEADS):
    """Fuse/pre-scale weights and pack small vectors + attention mask. Run once."""
    k = p["wq"].shape[0]
    hidden = p["w1"].shape[1]
    rows = batch * seq_len
    assert hidden <= 128 and rows <= 128, "aux packing assumes hidden, B*T <= 128"

    scale = jnp.float32(1.0 / (k ** 0.25))
    wqkv = jnp.concatenate(
        [p["wq"] * scale, p["wk"] * scale, p["wv"]], axis=1).astype(jnp.bfloat16)
    wu = p["wu"].astype(jnp.bfloat16)
    w1 = p["w1"].astype(jnp.bfloat16)
    w2 = p["w2"].astype(jnp.bfloat16)

    # pack the seven tiny vectors + block-diagonal mask into one f32 array
    aux = np.zeros((8 + rows, 128), np.float32)
    aux[0, :k] = np.asarray(p["bu"], np.float32).reshape(-1)
    aux[1, :k] = np.asarray(p["g1"], np.float32).reshape(-1)
    aux[2, :k] = np.asarray(p["be1"], np.float32).reshape(-1)
    aux[3, :hidden] = np.asarray(p["b1"], np.float32).reshape(-1)
    aux[4, :k] = np.asarray(p["b2"], np.float32).reshape(-1)
    aux[5, :k] = np.asarray(p["g2"], np.float32).reshape(-1)
    aux[6, :k] = np.asarray(p["be2"], np.float32).reshape(-1)
    blk = np.arange(rows) // seq_len
    aux[8:8 + rows, :rows] = np.where(
        blk[:, None] == blk[None, :], 0.0, MASK_VALUE).astype(np.float32)

    return wqkv, wu, w1, w2, jnp.asarray(aux)


# ------------------------------ jitted forward --------------------------------
@functools.partial(jax.jit, static_argnames=("heads",))
def transformer_block(x, wqkv, wu, w1, w2, aux, heads=HEADS):
    b, t, k = x.shape
    rows = b * t
    x2d = x.reshape(rows, k)             # flatten batch+sequence into M dim

    kernel = functools.partial(transformer_block_kernel,
                               heads=heads, use_mask=(b > 1))
    out2d = pl.pallas_call(
        kernel,
        out_shape=jax.ShapeDtypeStruct((rows, k), x.dtype),
        grid_spec=pltpu.PrefetchScalarGridSpec(
            num_scalar_prefetch=0,
            grid=(1,),                   # whole problem fits in VMEM: one step
            in_specs=[
                pl.BlockSpec((rows, k), lambda i: (0, 0)),
                pl.BlockSpec(wqkv.shape, lambda i: (0, 0)),
                pl.BlockSpec(wu.shape, lambda i: (0, 0)),
                pl.BlockSpec(w1.shape, lambda i: (0, 0)),
                pl.BlockSpec(w2.shape, lambda i: (0, 0)),
                pl.BlockSpec(aux.shape, lambda i: (0, 0)),
            ],
            out_specs=pl.BlockSpec((rows, k), lambda i: (0, 0)),
        ),
        compiler_params=pltpu.CompilerParams(
            dimension_semantics=("arbitrary",)),
    )(x2d, wqkv, wu, w1, w2, aux)
    return out2d.reshape(b, t, k)


# --------------------- pure-JAX reference (for verification) -----------------
def transformer_block_ref(x, p, heads=HEADS):
    b, t, k = x.shape
    h = heads
    scale = 1.0 / (k ** 0.25)
    q = (x @ p["wq"]).reshape(b, t, h, k).transpose(0, 2, 1, 3) * scale
    kk = (x @ p["wk"]).reshape(b, t, h, k).transpose(0, 2, 1, 3) * scale
    v = (x @ p["wv"]).reshape(b, t, h, k).transpose(0, 2, 1, 3)
    dot = jax.nn.softmax(jnp.einsum("bhtk,bhsk->bhts", q, kk), axis=-1)
    out = jnp.einsum("bhts,bhsk->bhtk", dot, v).transpose(0, 2, 1, 3).reshape(b, t, h * k)
    attended = out @ p["wu"] + p["bu"]

    def ln(y, g, be):
        mu = jnp.mean(y, axis=-1, keepdims=True)
        var = jnp.mean((y - mu) ** 2, axis=-1, keepdims=True)
        return (y - mu) * jax.lax.rsqrt(var + LN_EPS) * g + be

    y = ln(attended + x, p["g1"], p["be1"])
    ff = jnp.maximum(y @ p["w1"] + p["b1"], 0.0) @ p["w2"] + p["b2"]
    return ln(ff + y, p["g2"], p["be2"])


# ------------------------------ main ------------------------------------------
def make_params(key):
    keys = jax.random.split(key, 10)
    s = 0.05
    return {
        "wq": jax.random.normal(keys[0], (K, HEADS * K), jnp.float32) * s,
        "wk": jax.random.normal(keys[1], (K, HEADS * K), jnp.float32) * s,
        "wv": jax.random.normal(keys[2], (K, HEADS * K), jnp.float32) * s,
        "wu": jax.random.normal(keys[3], (HEADS * K, K), jnp.float32) * s,
        "bu": jax.random.normal(keys[4], (1, K), jnp.float32) * s,
        "g1": jnp.ones((1, K), jnp.float32),
        "be1": jnp.zeros((1, K), jnp.float32),
        "w1": jax.random.normal(keys[5], (K, HIDDEN), jnp.float32) * s,
        "b1": jax.random.normal(keys[6], (1, HIDDEN), jnp.float32) * s,
        "w2": jax.random.normal(keys[7], (HIDDEN, K), jnp.float32) * s,
        "b2": jax.random.normal(keys[8], (1, K), jnp.float32) * s,
        "g2": jnp.ones((1, K), jnp.float32),
        "be2": jnp.zeros((1, K), jnp.float32),
    }


if __name__ == "__main__":
    key = jax.random.PRNGKey(0)
    kx, kp = jax.random.split(key)
    x = jax.random.normal(kx, (B, T, K), jnp.float32)
    params = make_params(kp)

    # one-time fusion/packing (kept out of the per-call path)
    prepared = prepare_params(params, B, T, HEADS)

    out = transformer_block(x, *prepared)
    out = jax.block_until_ready(out)

    ref = transformer_block_ref(x, params)
    assert out.shape == (B, T, K)
    # tolerance accounts for bf16 MXU operands + approx softmax reciprocal
    err = float(jnp.max(jnp.abs(out - ref)))
    assert jnp.allclose(out, ref, atol=2e-2, rtol=2e-2), err

    print("KERNEL_OK")
</pallas_src>

<mosaic_0001>
module attributes {stable_mosaic.version = 11 : i64} {
  func.func @transformer_block_kernel(%arg0: i32, %arg1: memref<16x32xf32, #tpu.memory_space<vmem>>, %arg2: memref<32x384xbf16, #tpu.memory_space<vmem>>, %arg3: memref<128x32xbf16, #tpu.memory_space<vmem>>, %arg4: memref<32x128xbf16, #tpu.memory_space<vmem>>, %arg5: memref<128x32xbf16, #tpu.memory_space<vmem>>, %arg6: memref<24x128xf32, #tpu.memory_space<vmem>>, %arg7: memref<16x32xf32, #tpu.memory_space<vmem>>) attributes {dimension_semantics = [#tpu.dimension_semantics<arbitrary>], iteration_bounds = array<i64: 1>, scalar_prefetch = 0 : i64, scratch_operands = 0 : i64, tpu.core_type = #tpu.core_type<tc>, window_params = [{pipeline_mode = #tpu.pipeline_mode<synchronous>, transform_indices = @transform_0, window_bounds = array<i64: 16, 32>}, {pipeline_mode = #tpu.pipeline_mode<synchronous>, transform_indices = @transform_1, window_bounds = array<i64: 32, 384>}, {pipeline_mode = #tpu.pipeline_mode<synchronous>, transform_indices = @transform_2, window_bounds = array<i64: 128, 32>}, {pipeline_mode = #tpu.pipeline_mode<synchronous>, transform_indices = @transform_3, window_bounds = array<i64: 32, 128>}, {pipeline_mode = #tpu.pipeline_mode<synchronous>, transform_indices = @transform_4, window_bounds = array<i64: 128, 32>}, {pipeline_mode = #tpu.pipeline_mode<synchronous>, transform_indices = @transform_5, window_bounds = array<i64: 24, 128>}, {pipeline_mode = #tpu.pipeline_mode<synchronous>, transform_indices = @transform_6, window_bounds = array<i64: 16, 32>}]} {
    %c0 = arith.constant 0 : index
    %c0_0 = arith.constant 0 : index
    %0 = vector.load %arg1[%c0, %c0_0] : memref<16x32xf32, #tpu.memory_space<vmem>>, vector<16x32xf32>
    %c0_1 = arith.constant 0 : index
    %c0_2 = arith.constant 0 : index
    %1 = vector.load %arg6[%c0_1, %c0_2] : memref<24x128xf32, #tpu.memory_space<vmem>>, vector<24x128xf32>
    %2 = vector.extract_strided_slice %1 {offsets = [0, 0], sizes = [1, 32], strides = [1, 1]} : vector<24x128xf32> to vector<1x32xf32>
    %3 = vector.extract_strided_slice %1 {offsets = [1, 0], sizes = [1, 32], strides = [1, 1]} : vector<24x128xf32> to vector<1x32xf32>
    %4 = vector.extract_strided_slice %1 {offsets = [2, 0], sizes = [1, 32], strides = [1, 1]} : vector<24x128xf32> to vector<1x32xf32>
    %5 = vector.extract_strided_slice %1 {offsets = [3, 0], sizes = [1, 128], strides = [1, 1]} : vector<24x128xf32> to vector<1x128xf32>
    %6 = vector.extract_strided_slice %1 {offsets = [4, 0], sizes = [1, 32], strides = [1, 1]} : vector<24x128xf32> to vector<1x32xf32>
    %7 = vector.extract_strided_slice %1 {offsets = [5, 0], sizes = [1, 32], strides = [1, 1]} : vector<24x128xf32> to vector<1x32xf32>
    %8 = vector.extract_strided_slice %1 {offsets = [6, 0], sizes = [1, 32], strides = [1, 1]} : vector<24x128xf32> to vector<1x32xf32>
    %9 = vector.extract_strided_slice %1 {offsets = [8, 0], sizes = [16, 16], strides = [1, 1]} : vector<24x128xf32> to vector<16x16xf32>
    %10 = arith.truncf %0 : vector<16x32xf32> to vector<16x32xbf16>
    %c0_3 = arith.constant 0 : index
    %c0_4 = arith.constant 0 : index
    %11 = vector.load %arg2[%c0_3, %c0_4] : memref<32x384xbf16, #tpu.memory_space<vmem>>, vector<32x384xbf16>
    %cst = arith.constant dense<0.000000e+00> : vector<16x384xf32>
    %12 = tpu.matmul %10, %11, %cst {dimension_numbers = #tpu.dot_dimension_numbers<[1], [0], [0], [1], [0, 0, 1, 1], [], []>} : vector<16x32xbf16>, vector<32x384xbf16>, vector<16x384xf32> -> vector<16x384xf32>
    %13 = vector.extract_strided_slice %12 {offsets = [0, 0], sizes = [16, 32], strides = [1, 1]} : vector<16x384xf32> to vector<16x32xf32>
    %14 = arith.truncf %13 : vector<16x32xf32> to vector<16x32xbf16>
    %15 = vector.extract_strided_slice %12 {offsets = [0, 128], sizes = [16, 32], strides = [1, 1]} : vector<16x384xf32> to vector<16x32xf32>
    %16 = arith.truncf %15 : vector<16x32xf32> to vector<16x32xbf16>
    %17 = vector.extract_strided_slice %12 {offsets = [0, 256], sizes = [16, 32], strides = [1, 1]} : vector<16x384xf32> to vector<16x32xf32>
    %18 = arith.truncf %17 : vector<16x32xf32> to vector<16x32xbf16>
    %cst_5 = arith.constant dense<0.000000e+00> : vector<16x16xf32>
    %19 = tpu.matmul %14, %16, %cst_5 {dimension_numbers = #tpu.dot_dimension_numbers<[1], [1], [0], [0], [0, 0, 1, 0], [], []>} : vector<16x32xbf16>, vector<16x32xbf16>, vector<16x16xf32> -> vector<16x16xf32>
    %20 = arith.addf %19, %9 : vector<16x16xf32>
    %cst_6 = arith.constant dense<0xFF800000> : vector<16xf32>
    %21 = vector.multi_reduction <maximumf>, %20, %cst_6 [1] : vector<16x16xf32> to vector<16xf32>
    %22 = vector.shape_cast %21 : vector<16xf32> to vector<16x1xf32>
    %23 = vector.broadcast %22 : vector<16x1xf32> to vector<16x16xf32>
    %24 = arith.subf %20, %23 : vector<16x16xf32>
    %25 = math.exp %24 : vector<16x16xf32>
    %cst_7 = arith.constant dense<0.000000e+00> : vector<16xf32>
    %26 = vector.multi_reduction <add>, %25, %cst_7 [1] : vector<16x16xf32> to vector<16xf32>
    %27 = vector.shape_cast %26 : vector<16xf32> to vector<16x1xf32>
    %28 = tpu.reciprocal %27 {approx = true} : vector<16x1xf32> -> vector<16x1xf32>
    %29 = vector.broadcast %28 : vector<16x1xf32> to vector<16x16xf32>
    %30 = arith.mulf %25, %29 : vector<16x16xf32>
    %31 = arith.truncf %30 : vector<16x16xf32> to vector<16x16xbf16>
    %cst_8 = arith.constant dense<0.000000e+00> : vector<16x32xf32>
    %32 = tpu.matmul %31, %18, %cst_8 {dimension_numbers = #tpu.dot_dimension_numbers<[1], [0], [0], [1], [0, 0, 1, 1], [], []>} : vector<16x16xbf16>, vector<16x32xbf16>, vector<16x32xf32> -> vector<16x32xf32>
    %33 = vector.extract_strided_slice %12 {offsets = [0, 32], sizes = [16, 32], strides = [1, 1]} : vector<16x384xf32> to vector<16x32xf32>
    %34 = arith.truncf %33 : vector<16x32xf32> to vector<16x32xbf16>
    %35 = vector.extract_strided_slice %12 {offsets = [0, 160], sizes = [16, 32], strides = [1, 1]} : vector<16x384xf32> to vector<16x32xf32>
    %36 = arith.truncf %35 : vector<16x32xf32> to vector<16x32xbf16>
    %37 = vector.extract_strided_slice %12 {offsets = [0, 288], sizes = [16, 32], strides = [1, 1]} : vector<16x384xf32> to vector<16x32xf32>
    %38 = arith.truncf %37 : vector<16x32xf32> to vector<16x32xbf16>
    %cst_9 = arith.constant dense<0.000000e+00> : vector<16x16xf32>
    %39 = tpu.matmul %34, %36, %cst_9 {dimension_numbers = #tpu.dot_dimension_numbers<[1], [1], [0], [0], [0, 0, 1, 0], [], []>} : vector<16x32xbf16>, vector<16x32xbf16>, vector<16x16xf32> -> vector<16x16xf32>
    %40 = arith.addf %39, %9 : vector<16x16xf32>
    %cst_10 = arith.constant dense<0xFF800000> : vector<16xf32>
    %41 = vector.multi_reduction <maximumf>, %40, %cst_10 [1] : vector<16x16xf32> to vector<16xf32>
    %42 = vector.shape_cast %41 : vector<16xf32> to vector<16x1xf32>
    %43 = vector.broadcast %42 : vector<16x1xf32> to vector<16x16xf32>
    %44 = arith.subf %40, %43 : vector<16x16xf32>
    %45 = math.exp %44 : vector<16x16xf32>
    %cst_11 = arith.constant dense<0.000000e+00> : vector<16xf32>
    %46 = vector.multi_reduction <add>, %45, %cst_11 [1] : vector<16x16xf32> to vector<16xf32>
    %47 = vector.shape_cast %46 : vector<16xf32> to vector<16x1xf32>
    %48 = tpu.reciprocal %47 {approx = true} : vector<16x1xf32> -> vector<16x1xf32>
    %49 = vector.broadcast %48 : vector<16x1xf32> to vector<16x16xf32>
    %50 = arith.mulf %45, %49 : vector<16x16xf32>
    %51 = arith.truncf %50 : vector<16x16xf32> to vector<16x16xbf16>
    %cst_12 = arith.constant dense<0.000000e+00> : vector<16x32xf32>
    %52 = tpu.matmul %51, %38, %cst_12 {dimension_numbers = #tpu.dot_dimension_numbers<[1], [0], [0], [1], [0, 0, 1, 1], [], []>} : vector<16x16xbf16>, vector<16x32xbf16>, vector<16x32xf32> -> vector<16x32xf32>
    %53 = vector.extract_strided_slice %12 {offsets = [0, 64], sizes = [16, 32], strides = [1, 1]} : vector<16x384xf32> to vector<16x32xf32>
    %54 = arith.truncf %53 : vector<16x32xf32> to vector<16x32xbf16>
    %55 = vector.extract_strided_slice %12 {offsets = [0, 192], sizes = [16, 32], strides = [1, 1]} : vector<16x384xf32> to vector<16x32xf32>
    %56 = arith.truncf %55 : vector<16x32xf32> to vector<16x32xbf16>
    %57 = vector.extract_strided_slice %12 {offsets = [0, 320], sizes = [16, 32], strides = [1, 1]} : vector<16x384xf32> to vector<16x32xf32>
    %58 = arith.truncf %57 : vector<16x32xf32> to vector<16x32xbf16>
    %cst_13 = arith.constant dense<0.000000e+00> : vector<16x16xf32>
    %59 = tpu.matmul %54, %56, %cst_13 {dimension_numbers = #tpu.dot_dimension_numbers<[1], [1], [0], [0], [0, 0, 1, 0], [], []>} : vector<16x32xbf16>, vector<16x32xbf16>, vector<16x16xf32> -> vector<16x16xf32>
    %60 = arith.addf %59, %9 : vector<16x16xf32>
    %cst_14 = arith.constant dense<0xFF800000> : vector<16xf32>
    %61 = vector.multi_reduction <maximumf>, %60, %cst_14 [1] : vector<16x16xf32> to vector<16xf32>
    %62 = vector.shape_cast %61 : vector<16xf32> to vector<16x1xf32>
    %63 = vector.broadcast %62 : vector<16x1xf32> to vector<16x16xf32>
    %64 = arith.subf %60, %63 : vector<16x16xf32>
    %65 = math.exp %64 : vector<16x16xf32>
    %cst_15 = arith.constant dense<0.000000e+00> : vector<16xf32>
    %66 = vector.multi_reduction <add>, %65, %cst_15 [1] : vector<16x16xf32> to vector<16xf32>
    %67 = vector.shape_cast %66 : vector<16xf32> to vector<16x1xf32>
    %68 = tpu.reciprocal %67 {approx = true} : vector<16x1xf32> -> vector<16x1xf32>
    %69 = vector.broadcast %68 : vector<16x1xf32> to vector<16x16xf32>
    %70 = arith.mulf %65, %69 : vector<16x16xf32>
    %71 = arith.truncf %70 : vector<16x16xf32> to vector<16x16xbf16>
    %cst_16 = arith.constant dense<0.000000e+00> : vector<16x32xf32>
    %72 = tpu.matmul %71, %58, %cst_16 {dimension_numbers = #tpu.dot_dimension_numbers<[1], [0], [0], [1], [0, 0, 1, 1], [], []>} : vector<16x16xbf16>, vector<16x32xbf16>, vector<16x32xf32> -> vector<16x32xf32>
    %73 = vector.extract_strided_slice %12 {offsets = [0, 96], sizes = [16, 32], strides = [1, 1]} : vector<16x384xf32> to vector<16x32xf32>
    %74 = arith.truncf %73 : vector<16x32xf32> to vector<16x32xbf16>
    %75 = vector.extract_strided_slice %12 {offsets = [0, 224], sizes = [16, 32], strides = [1, 1]} : vector<16x384xf32> to vector<16x32xf32>
    %76 = arith.truncf %75 : vector<16x32xf32> to vector<16x32xbf16>
    %77 = vector.extract_strided_slice %12 {offsets = [0, 352], sizes = [16, 32], strides = [1, 1]} : vector<16x384xf32> to vector<16x32xf32>
    %78 = arith.truncf %77 : vector<16x32xf32> to vector<16x32xbf16>
    %cst_17 = arith.constant dense<0.000000e+00> : vector<16x16xf32>
    %79 = tpu.matmul %74, %76, %cst_17 {dimension_numbers = #tpu.dot_dimension_numbers<[1], [1], [0], [0], [0, 0, 1, 0], [], []>} : vector<16x32xbf16>, vector<16x32xbf16>, vector<16x16xf32> -> vector<16x16xf32>
    %80 = arith.addf %79, %9 : vector<16x16xf32>
    %cst_18 = arith.constant dense<0xFF800000> : vector<16xf32>
    %81 = vector.multi_reduction <maximumf>, %80, %cst_18 [1] : vector<16x16xf32> to vector<16xf32>
    %82 = vector.shape_cast %81 : vector<16xf32> to vector<16x1xf32>
    %83 = vector.broadcast %82 : vector<16x1xf32> to vector<16x16xf32>
    %84 = arith.subf %80, %83 : vector<16x16xf32>
    %85 = math.exp %84 : vector<16x16xf32>
    %cst_19 = arith.constant dense<0.000000e+00> : vector<16xf32>
    %86 = vector.multi_reduction <add>, %85, %cst_19 [1] : vector<16x16xf32> to vector<16xf32>
    %87 = vector.shape_cast %86 : vector<16xf32> to vector<16x1xf32>
    %88 = tpu.reciprocal %87 {approx = true} : vector<16x1xf32> -> vector<16x1xf32>
    %89 = vector.broadcast %88 : vector<16x1xf32> to vector<16x16xf32>
    %90 = arith.mulf %85, %89 : vector<16x16xf32>
    %91 = arith.truncf %90 : vector<16x16xf32> to vector<16x16xbf16>
    %cst_20 = arith.constant dense<0.000000e+00> : vector<16x32xf32>
    %92 = tpu.matmul %91, %78, %cst_20 {dimension_numbers = #tpu.dot_dimension_numbers<[1], [0], [0], [1], [0, 0, 1, 1], [], []>} : vector<16x16xbf16>, vector<16x32xbf16>, vector<16x32xf32> -> vector<16x32xf32>
    %93 = tpu.concatenate %32, %52, %72, %92 in 1 : vector<16x32xf32>, vector<16x32xf32>, vector<16x32xf32>, vector<16x32xf32> -> vector<16x128xf32>
    %94 = arith.truncf %93 : vector<16x128xf32> to vector<16x128xbf16>
    %c0_21 = arith.constant 0 : index
    %c0_22 = arith.constant 0 : index
    %95 = vector.load %arg3[%c0_21, %c0_22] : memref<128x32xbf16, #tpu.memory_space<vmem>>, vector<128x32xbf16>
    %cst_23 = arith.constant dense<0.000000e+00> : vector<16x32xf32>
    %96 = tpu.matmul %94, %95, %cst_23 {dimension_numbers = #tpu.dot_dimension_numbers<[1], [0], [0], [1], [0, 0, 1, 1], [], []>} : vector<16x128xbf16>, vector<128x32xbf16>, vector<16x32xf32> -> vector<16x32xf32>
    %97 = vector.broadcast %2 : vector<1x32xf32> to vector<16x32xf32>
    %98 = arith.addf %96, %97 : vector<16x32xf32>
    %99 = arith.addf %98, %0 : vector<16x32xf32>
    %cst_24 = arith.constant dense<0.000000e+00> : vector<16xf32>
    %100 = vector.multi_reduction <add>, %99, %cst_24 [1] : vector<16x32xf32> to vector<16xf32>
    %101 = vector.shape_cast %100 : vector<16xf32> to vector<16x1xf32>
    %cst_25 = arith.constant 3.200000e+01 : f32
    %102 = vector.broadcast %cst_25 : f32 to vector<16x1xf32>
    %103 = arith.divf %101, %102 : vector<16x1xf32>
    %104 = vector.broadcast %103 : vector<16x1xf32> to vector<16x32xf32>
    %105 = arith.subf %99, %104 : vector<16x32xf32>
    %106 = arith.mulf %105, %105 : vector<16x32xf32>
    %cst_26 = arith.constant dense<0.000000e+00> : vector<16xf32>
    %107 = vector.multi_reduction <add>, %106, %cst_26 [1] : vector<16x32xf32> to vector<16xf32>
    %108 = vector.shape_cast %107 : vector<16xf32> to vector<16x1xf32>
    %cst_27 = arith.constant 3.200000e+01 : f32
    %109 = vector.broadcast %cst_27 : f32 to vector<16x1xf32>
    %110 = arith.divf %108, %109 : vector<16x1xf32>
    %111 = vector.broadcast %103 : vector<16x1xf32> to vector<16x32xf32>
    %112 = arith.subf %99, %111 : vector<16x32xf32>
    %cst_28 = arith.constant 9.99999974E-6 : f32
    %113 = vector.broadcast %cst_28 : f32 to vector<16x1xf32>
    %114 = arith.addf %110, %113 : vector<16x1xf32>
    %115 = math.rsqrt %114 : vector<16x1xf32>
    %116 = vector.broadcast %115 : vector<16x1xf32> to vector<16x32xf32>
    %117 = arith.mulf %112, %116 : vector<16x32xf32>
    %118 = vector.broadcast %3 : vector<1x32xf32> to vector<16x32xf32>
    %119 = arith.mulf %117, %118 : vector<16x32xf32>
    %120 = vector.broadcast %4 : vector<1x32xf32> to vector<16x32xf32>
    %121 = arith.addf %119, %120 : vector<16x32xf32>
    %122 = arith.truncf %121 : vector<16x32xf32> to vector<16x32xbf16>
    %c0_29 = arith.constant 0 : index
    %c0_30 = arith.constant 0 : index
    %123 = vector.load %arg4[%c0_29, %c0_30] : memref<32x128xbf16, #tpu.memory_space<vmem>>, vector<32x128xbf16>
    %cst_31 = arith.constant dense<0.000000e+00> : vector<16x128xf32>
    %124 = tpu.matmul %122, %123, %cst_31 {dimension_numbers = #tpu.dot_dimension_numbers<[1], [0], [0], [1], [0, 0, 1, 1], [], []>} : vector<16x32xbf16>, vector<32x128xbf16>, vector<16x128xf32> -> vector<16x128xf32>
    %125 = vector.broadcast %5 : vector<1x128xf32> to vector<16x128xf32>
    %126 = arith.addf %124, %125 : vector<16x128xf32>
    %cst_32 = arith.constant 0.000000e+00 : f32
    %127 = vector.broadcast %cst_32 : f32 to vector<16x128xf32>
    %128 = arith.maximumf %126, %127 : vector<16x128xf32>
    %129 = arith.truncf %128 : vector<16x128xf32> to vector<16x128xbf16>
    %c0_33 = arith.constant 0 : index
    %c0_34 = arith.constant 0 : index
    %130 = vector.load %arg5[%c0_33, %c0_34] : memref<128x32xbf16, #tpu.memory_space<vmem>>, vector<128x32xbf16>
    %cst_35 = arith.constant dense<0.000000e+00> : vector<16x32xf32>
    %131 = tpu.matmul %129, %130, %cst_35 {dimension_numbers = #tpu.dot_dimension_numbers<[1], [0], [0], [1], [0, 0, 1, 1], [], []>} : vector<16x128xbf16>, vector<128x32xbf16>, vector<16x32xf32> -> vector<16x32xf32>
    %132 = vector.broadcast %6 : vector<1x32xf32> to vector<16x32xf32>
    %133 = arith.addf %131, %132 : vector<16x32xf32>
    %134 = arith.addf %133, %121 : vector<16x32xf32>
    %cst_36 = arith.constant dense<0.000000e+00> : vector<16xf32>
    %135 = vector.multi_reduction <add>, %134, %cst_36 [1] : vector<16x32xf32> to vector<16xf32>
    %136 = vector.shape_cast %135 : vector<16xf32> to vector<16x1xf32>
    %cst_37 = arith.constant 3.200000e+01 : f32
    %137 = vector.broadcast %cst_37 : f32 to vector<16x1xf32>
    %138 = arith.divf %136, %137 : vector<16x1xf32>
    %139 = vector.broadcast %138 : vector<16x1xf32> to vector<16x32xf32>
    %140 = arith.subf %134, %139 : vector<16x32xf32>
    %141 = arith.mulf %140, %140 : vector<16x32xf32>
    %cst_38 = arith.constant dense<0.000000e+00> : vector<16xf32>
    %142 = vector.multi_reduction <add>, %141, %cst_38 [1] : vector<16x32xf32> to vector<16xf32>
    %143 = vector.shape_cast %142 : vector<16xf32> to vector<16x1xf32>
    %cst_39 = arith.constant 3.200000e+01 : f32
    %144 = vector.broadcast %cst_39 : f32 to vector<16x1xf32>
    %145 = arith.divf %143, %144 : vector<16x1xf32>
    %146 = vector.broadcast %138 : vector<16x1xf32> to vector<16x32xf32>
    %147 = arith.subf %134, %146 : vector<16x32xf32>
    %cst_40 = arith.constant 9.99999974E-6 : f32
    %148 = vector.broadcast %cst_40 : f32 to vector<16x1xf32>
    %149 = arith.addf %145, %148 : vector<16x1xf32>
    %150 = math.rsqrt %149 : vector<16x1xf32>
    %151 = vector.broadcast %150 : vector<16x1xf32> to vector<16x32xf32>
    %152 = arith.mulf %147, %151 : vector<16x32xf32>
    %153 = vector.broadcast %7 : vector<1x32xf32> to vector<16x32xf32>
    %154 = arith.mulf %152, %153 : vector<16x32xf32>
    %155 = vector.broadcast %8 : vector<1x32xf32> to vector<16x32xf32>
    %156 = arith.addf %154, %155 : vector<16x32xf32>
    %c0_41 = arith.constant 0 : index
    %c0_42 = arith.constant 0 : index
    %157 = vector.load %arg7[%c0_41, %c0_42] : memref<16x32xf32, #tpu.memory_space<vmem>>, vector<16x32xf32>
    tpu.vector_store %arg7[%c0_41, %c0_42], %156 {strides = array<i32>} : memref<16x32xf32, #tpu.memory_space<vmem>>, vector<16x32xf32>,
    return
  }
  func.func @transform_0(%arg0: i32) -> (i32, i32) {
    %c0_i32 = arith.constant 0 : i32
    %c0_i32_0 = arith.constant 0 : i32
    %c0_i32_1 = arith.constant 0 : i32
    return %c0_i32, %c0_i32_0 : i32, i32
  }
  func.func @transform_1(%arg0: i32) -> (i32, i32) {
    %c0_i32 = arith.constant 0 : i32
    %c0_i32_0 = arith.constant 0 : i32
    %c0_i32_1 = arith.constant 0 : i32
    return %c0_i32, %c0_i32_0 : i32, i32
  }
  func.func @transform_2(%arg0: i32) -> (i32, i32) {
    %c0_i32 = arith.constant 0 : i32
    %c0_i32_0 = arith.constant 0 : i32
    %c0_i32_1 = arith.constant 0 : i32
    return %c0_i32, %c0_i32_0 : i32, i32
  }
  func.func @transform_3(%arg0: i32) -> (i32, i32) {
    %c0_i32 = arith.constant 0 : i32
    %c0_i32_0 = arith.constant 0 : i32
    %c0_i32_1 = arith.constant 0 : i32
    return %c0_i32, %c0_i32_0 : i32, i32
  }
  func.func @transform_4(%arg0: i32) -> (i32, i32) {
    %c0_i32 = arith.constant 0 : i32
    %c0_i32_0 = arith.constant 0 : i32
    %c0_i32_1 = arith.constant 0 : i32
    return %c0_i32, %c0_i32_0 : i32, i32
  }
  func.func @transform_5(%arg0: i32) -> (i32, i32) {
    %c0_i32 = arith.constant 0 : i32
    %c0_i32_0 = arith.constant 0 : i32
    %c0_i32_1 = arith.constant 0 : i32
    return %c0_i32, %c0_i32_0 : i32, i32
  }
  func.func @transform_6(%arg0: i32) -> (i32, i32) {
    %c0_i32 = arith.constant 0 : i32
    %c0_i32_0 = arith.constant 0 : i32
    %c0_i32_1 = arith.constant 0 : i32
    return %c0_i32, %c0_i32_0 : i32, i32
  }
}

</mosaic_0001>

<llo_original>
// kernel: transformer_block.1
$region0: #{transformer_block.1}
  #allocation0 [shape = 'u32[]', space=smem, size = 0x4, offset = 0x4, fixed_abs, tag = 'smem constant byte address 0x4 - core index']
  #allocation1 [shape = 'u32[144,128]{1,0:T(1,128)}', space=vmem, size = 0x12000, scoped, tag = 'internal scratch']
  %s0 = inlined_call_operand.vmem [shape: f32[16,32], index: 0, kind: input, shape index: {}]
  %s1 = inlined_call_operand.vmem [shape: bf16[32,384], index: 1, kind: input, shape index: {}]
  %s2 = inlined_call_operand.vmem [shape: bf16[128,32], index: 2, kind: input, shape index: {}]
  %s3 = inlined_call_operand.vmem [shape: bf16[32,128], index: 3, kind: input, shape index: {}]
  %s4 = inlined_call_operand.vmem [shape: bf16[128,32], index: 4, kind: input, shape index: {}]
  %s5 = inlined_call_operand.vmem [shape: f32[24,128], index: 5, kind: input, shape index: {}]
  %s6 = inlined_call_operand.hbm [shape: f32[16,32], index: 6, kind: output, shape index: {}]
  %s7 = sld [smem:[#allocation0]]
  $region34: #{transformer_block.1} parent=0
    _
  %s9 = ssub.s32 1, %s7
  %s10 = scalar_select 0, %s9, %s7
  $region1: #{transformer_block.1} parent=0
    #allocation2 [shape = 'u8[8192]{0}', space=vmem, size = 0x2000, scoped, tag = 'output window, operand 0, single buffered']
    #allocation3 [shape = 's32[1]{0}', space=sflag, size = 0x4, scoped, tag = 'scoped memory for transformer_block.1']
    %11 = vsyncpa [#allocation3], 0
    // Predicated region
    $region2: #{transformer_block.1} parent=1 // pred_check
      _
    $region3: #{transformer_block.1} parent=1 // pred_check_branch
      %13 = sbr.rel (0) target = $region5
    $region4: #{transformer_block.1} parent=1 // pred_region
      _
    $region5: #{transformer_block.1} parent=1 // pred_fallthru
      _
    // Predicated region
    $region6: #{transformer_block.1} parent=1 // pred_check
      _
    $region7: #{transformer_block.1} parent=1 // pred_check_branch
      %15 = sbr.rel (0) target = $region9
    $region8: #{transformer_block.1} parent=1 // pred_region
      _
    $region9: #{transformer_block.1} parent=1 // pred_fallthru
      _
    // Predicated region
    $region10: #{transformer_block.1} parent=1 // pred_check
      _
    $region11: #{transformer_block.1} parent=1 // pred_check_branch
      %17 = sbr.rel (0) target = $region13
    $region12: #{transformer_block.1} parent=1 // pred_region
      _
    $region13: #{transformer_block.1} parent=1 // pred_fallthru
      _
    // Predicated region
    $region14: #{transformer_block.1} parent=1 // pred_check
      _
    $region15: #{transformer_block.1} parent=1 // pred_check_branch
      %19 = sbr.rel (0) target = $region17
    $region16: #{transformer_block.1} parent=1 // pred_region
      _
    $region17: #{transformer_block.1} parent=1 // pred_fallthru
      _
    // Predicated region
    $region18: #{transformer_block.1} parent=1 // pred_check
      _
    $region19: #{transformer_block.1} parent=1 // pred_check_branch
      %21 = sbr.rel (0) target = $region21
    $region20: #{transformer_block.1} parent=1 // pred_region
      _
    $region21: #{transformer_block.1} parent=1 // pred_fallthru
      _
    // Predicated region
    $region22: #{transformer_block.1} parent=1 // pred_check
      _
    $region23: #{transformer_block.1} parent=1 // pred_check_branch
      %23 = sbr.rel (0) target = $region25
    $region24: #{transformer_block.1} parent=1 // pred_region
      _
    $region25: #{transformer_block.1} parent=1 // pred_fallthru
      _
    %v25 = vld [vmem:[%s0] sm:$0xff]
    %v26 = vld [vmem:[%s0 + $0x8] sm:$0xff]
    %v27 = vld [vmem:[%s5] sm:$0xff]
    %v28 = vld [vmem:[%s5 + $0x8] sm:$0xff]
    %v29 = vld [vmem:[%s5 + $0x10] sm:$0xff]
    %v30 = vpack.c.bf16 %v26, %v25
    %v31 = vld [vmem:[%s1] sm:$0xff]
    %v32 = vld [vmem:[%s1 + $0x8] sm:$0xf]
    %v33 = vld [vmem:[%s1 + $0xc] sm:$0xff]
    %v34 = vld [vmem:[%s1 + $0x14] sm:$0xf]
    %v35 = vld [vmem:[%s1 + $0x18] sm:$0xff]
    %v36 = vld [vmem:[%s1 + $0x20] sm:$0xf]
    %v37 = vld [vmem:[%s1 + $0x24] sm:$0xff]
    %v38 = vld [vmem:[%s1 + $0x2c] sm:$0xf]
    %v47 = vunpack.c.l.b16 %v31
    %v48 = vunpack.c.h.b16 %v31
    %v49 = vunpack.c.l.b16 %v32
    %v50 = vunpack.c.l.b16 %v33
    %v51 = vunpack.c.h.b16 %v33
    %v52 = vunpack.c.l.b16 %v34
    %v53 = vunpack.c.l.b16 %v35
    %v54 = vunpack.c.h.b16 %v35
    %v55 = vunpack.c.l.b16 %v36
    %v56 = vunpack.c.l.b16 %v37
    %v57 = vunpack.c.h.b16 %v37
    %v58 = vunpack.c.l.b16 %v38
    %v59 = vpack.c.b16 %v50, %v47
    %v60 = vpack.c.b16 %v51, %v48
    %v61 = vpack.c.b16 %v52, %v49
    %v62 = vpack.c.b16 %v56, %v53
    %v63 = vpack.c.b16 %v57, %v54
    %v64 = vpack.c.b16 %v58, %v55
    %vm71 = vcmask 261120
    %v73 = vsel %vm71, %v30, 0
    %75 = vmatprep.subr.bf16.mxu0 %v60
    %76 = vmatpush1.bf16.msra.mxu0 %v59
    %77 = vmatprep.subr.bf16.mxu0 %v63
    %78 = vmatpush1.bf16.msra.mxu0 %v62
    %79 = vmatprep.subr.bf16.mxu0 0
    %80 = vmatpush1.bf16.msra.mxu0 0
    %81 = vmatprep.subr.bf16.mxu0 0
    %82 = vmatpush1.bf16.msra.mxu0 0
    %83 = vmatprep.subr.bf16.mxu0 0
    %84 = vmatpush1.bf16.msra.mxu0 0
    %85 = vmatprep.subr.bf16.mxu0 0
    %86 = vmatpush1.bf16.msra.mxu0 0
    %87 = vmatprep.subr.bf16.mxu0 0
    %88 = vmatpush1.bf16.msra.mxu0 0
    %89 = vmatprep.subr.bf16.mxu0 0
    %90 = vmatpush1.bf16.msra.mxu0 0
    %91 = vmatprep.subr.bf16.mxu0 0
    %92 = vmatpush1.bf16.msra.mxu0 0
    %93 = vmatprep.subr.bf16.mxu0 0
    %94 = vmatpush1.bf16.msra.mxu0 0
    %95 = vmatprep.subr.bf16.mxu0 0
    %96 = vmatpush1.bf16.msra.mxu0 0
    %97 = vmatprep.subr.bf16.mxu0 0
    %98 = vmatpush1.bf16.msra.mxu0 0
    %99 = vmatprep.subr.bf16.mxu0 0
    %100 = vmatpush1.bf16.msra.mxu0 0
    %101 = vmatprep.subr.bf16.mxu0 0
    %102 = vmatpush1.bf16.msra.mxu0 0
    %103 = vmatprep.subr.bf16.mxu0 0
    %104 = vmatpush1.bf16.msra.mxu0 0
    %105 = vmatprep.subr.bf16.mxu0 0
    %106 = vmatpush1.bf16.msra.mxu0 0
    %107 = vmatprep.mubr.bf16.mxu0 0
    %108 = vmatmul.mubr.bf16.gmra.mrb[0].mxu0 %v73
    %v109 = vpop.f32.mrb[0].mxu0
    %v110 = vadd.f32 0.0, %v109
    %v111 = vpop.f32.mrb[0].mxu0
    %v112 = vadd.f32 0.0, %v111
    %v113 = vpop.f32.mrb[0].mxu0
    %v114 = vadd.f32 0.0, %v113
    %v115 = vpop.f32.mrb[0].mxu0
    %v116 = vadd.f32 0.0, %v115
    %117 = vdwg.mxu0
    %118 = vmatprep.subr.bf16.mxu0 0
    %119 = vmatpush1.bf16.msra.mxu0 %v61
    %120 = vmatprep.subr.bf16.mxu0 0
    %121 = vmatpush1.bf16.msra.mxu0 %v64
    %122 = vmatprep.subr.bf16.mxu0 0
    %123 = vmatpush1.bf16.msra.mxu0 0
    %124 = vmatprep.subr.bf16.mxu0 0
    %125 = vmatpush1.bf16.msra.mxu0 0
    %126 = vmatprep.subr.bf16.mxu0 0
    %127 = vmatpush1.bf16.msra.mxu0 0
    %128 = vmatprep.subr.bf16.mxu0 0
    %129 = vmatpush1.bf16.msra.mxu0 0
    %130 = vmatprep.subr.bf16.mxu0 0
    %131 = vmatpush1.bf16.msra.mxu0 0
    %132 = vmatprep.subr.bf16.mxu0 0
    %133 = vmatpush1.bf16.msra.mxu0 0
    %134 = vmatprep.subr.bf16.mxu0 0
    %135 = vmatpush1.bf16.msra.mxu0 0
    %136 = vmatprep.subr.bf16.mxu0 0
    %137 = vmatpush1.bf16.msra.mxu0 0
    %138 = vmatprep.subr.bf16.mxu0 0
    %139 = vmatpush1.bf16.msra.mxu0 0
    %140 = vmatprep.subr.bf16.mxu0 0
    %141 = vmatpush1.bf16.msra.mxu0 0
    %142 = vmatprep.subr.bf16.mxu0 0
    %143 = vmatpush1.bf16.msra.mxu0 0
    %144 = vmatprep.subr.bf16.mxu0 0
    %145 = vmatpush1.bf16.msra.mxu0 0
    %146 = vmatprep.subr.bf16.mxu0 0
    %147 = vmatpush1.bf16.msra.mxu0 0
    %148 = vmatprep.subr.bf16.mxu0 0
    %149 = vmatpush1.bf16.msra.mxu0 0
    %150 = vmatprep.mubr.bf16.mxu0 0
    %151 = vmatmul.mubr.bf16.gmra.mrb[0].mxu0 %v73
    %v152 = vpop.f32.mrb[0].mxu0
    %v153 = vadd.f32 0.0, %v152
    %v154 = vpop.f32.mrb[0].mxu0
    %v155 = vpop.f32.mrb[0].mxu0
    %v156 = vadd.f32 0.0, %v155
    %v157 = vpop.f32.mrb[0].mxu0
    %158 = vdwg.mxu0
    %v159 = vpack.c.bf16 %v114, %v110
    %v160 = vpack.c.bf16 %v116, %v112
    %v161 = vpack.c.bf16 %v156, %v153
    %v163 = vsel %vm71, %v159, 0
    %v166 = vsel %vm71, %v160, 0
    %168 = vmatprep.subr.bf16.mxu0 0
    %169 = vmatpush1.bf16.xpose.msra.mxu0 %v166
    %170 = vmatprep.subr.bf16.mxu0 0
    %171 = vmatpush1.bf16.xpose.msra.mxu0 0
    %172 = vmatprep.subr.bf16.mxu0 0
    %173 = vmatpush1.bf16.xpose.msra.mxu0 0
    %174 = vmatprep.subr.bf16.mxu0 0
    %175 = vmatpush1.bf16.xpose.msra.mxu0 0
    %176 = vmatprep.subr.bf16.mxu0 0
    %177 = vmatpush1.bf16.xpose.msra.mxu0 0
    %178 = vmatprep.subr.bf16.mxu0 0
    %179 = vmatpush1.bf16.xpose.msra.mxu0 0
    %180 = vmatprep.subr.bf16.mxu0 0
    %181 = vmatpush1.bf16.xpose.msra.mxu0 0
    %182 = vmatprep.subr.bf16.mxu0 0
    %183 = vmatpush1.bf16.xpose.msra.mxu0 0
    %184 = vmatprep.subr.bf16.mxu0 0
    %185 = vmatpush1.bf16.xpose.msra.mxu0 0
    %186 = vmatprep.subr.bf16.mxu0 0
    %187 = vmatpush1.bf16.xpose.msra.mxu0 0
    %188 = vmatprep.subr.bf16.mxu0 0
    %189 = vmatpush1.bf16.xpose.msra.mxu0 0
    %190 = vmatprep.subr.bf16.mxu0 0
    %191 = vmatpush1.bf16.xpose.msra.mxu0 0
    %192 = vmatprep.subr.bf16.mxu0 0
    %193 = vmatpush1.bf16.xpose.msra.mxu0 0
    %194 = vmatprep.subr.bf16.mxu0 0
    %195 = vmatpush1.bf16.xpose.msra.mxu0 0
    %196 = vmatprep.subr.bf16.mxu0 0
    %197 = vmatpush1.bf16.xpose.msra.mxu0 0
    %198 = vmatprep.subr.bf16.mxu0 0
    %199 = vmatpush1.bf16.xpose.msra.mxu0 0
    %200 = vmatprep.mubr.bf16.mxu0 0
    %201 = vmatmul.mubr.bf16.gmra.mrb[0].mxu0 %v163
    %v202 = vpop.f32.mrb[0].mxu0
    %v203 = vadd.f32 %v28, %v202
    %v204 = vpop.f32.mrb[0].mxu0
    %v205 = vpop.f32.mrb[0].mxu0
    %v206 = vadd.f32 %v29, %v205
    %v207 = vpop.f32.mrb[0].mxu0
    %208 = vdwg.mxu0
    %vm209 = vcmask 130048
    %v210 = vsel %vm209, %v203, -inf
    %211 = vmax.xlane.f32.xlu0 %v210
    %v212 = vpop.xlane.xlu0 %211
    %v213 = vsel %vm209, %v206, -inf
    %214 = vmax.xlane.f32.xlu0 %v213
    %v215 = vpop.xlane.xlu0 %214
    %v216 = vsub.f32 %v203, %v212
    %v217 = vsub.f32 %v206, %v215
    %v218 = vmul.f32 %v216, 1.442695
    %v219 = vpow.pop %v218
    %v220 = vmul.f32 %v217, 1.442695
    %v221 = vpow.pop %v220
    %v222 = vsel %vm209, %v219, 0.0
    %223 = vadd.xlane.f32.xlu0 %v222
    %v224 = vpop.xlane.xlu0 %223
    %v225 = vsel %vm209, %v221, 0.0
    %226 = vadd.xlane.f32.xlu0 %v225
    %v227 = vpop.xlane.xlu0 %226
    %v228 = vrcp.pop %v224
    %v229 = vrcp.pop %v227
    %v230 = vmul.f32 %v219, %v228
    %v231 = vmul.f32 %v221, %v229
    %v232 = vpack.c.bf16 %v231, %v230
    %v234 = vsel %vm209, %v232, 0
    %236 = vmatprep.subr.bf16.mxu0 0
    %237 = vmatpush1.bf16.msra.mxu0 %v161
    %238 = vmatprep.subr.bf16.mxu0 0
    %239 = vmatpush1.bf16.msra.mxu0 0
    %240 = vmatprep.subr.bf16.mxu0 0
    %241 = vmatpush1.bf16.msra.mxu0 0
    %242 = vmatprep.subr.bf16.mxu0 0
    %243 = vmatpush1.bf16.msra.mxu0 0
    %244 = vmatprep.subr.bf16.mxu0 0
    %245 = vmatpush1.bf16.msra.mxu0 0
    %246 = vmatprep.subr.bf16.mxu0 0
    %247 = vmatpush1.bf16.msra.mxu0 0
    %248 = vmatprep.subr.bf16.mxu0 0
    %249 = vmatpush1.bf16.msra.mxu0 0
    %250 = vmatprep.subr.bf16.mxu0 0
    %251 = vmatpush1.bf16.msra.mxu0 0
    %252 = vmatprep.subr.bf16.mxu0 0
    %253 = vmatpush1.bf16.msra.mxu0 0
    %254 = vmatprep.subr.bf16.mxu0 0
    %255 = vmatpush1.bf16.msra.mxu0 0
    %256 = vmatprep.subr.bf16.mxu0 0
    %257 = vmatpush1.bf16.msra.mxu0 0
    %258 = vmatprep.subr.bf16.mxu0 0
    %259 = vmatpush1.bf16.msra.mxu0 0
    %260 = vmatprep.subr.bf16.mxu0 0
    %261 = vmatpush1.bf16.msra.mxu0 0
    %262 = vmatprep.subr.bf16.mxu0 0
    %263 = vmatpush1.bf16.msra.mxu0 0
    %264 = vmatprep.subr.bf16.mxu0 0
    %265 = vmatpush1.bf16.msra.mxu0 0
    %266 = vmatprep.subr.bf16.mxu0 0
    %267 = vmatpush1.bf16.msra.mxu0 0
    %268 = vmatprep.mubr.bf16.mxu0 0
    %269 = vmatmul.mubr.bf16.gmra.mrb[0].mxu0 %v234
    %v270 = vpop.f32.mrb[0].mxu0
    %v271 = vadd.f32 0.0, %v270
    %v272 = vpop.f32.mrb[0].mxu0
    %v273 = vpop.f32.mrb[0].mxu0
    %v274 = vadd.f32 0.0, %v273
    %v275 = vpop.f32.mrb[0].mxu0
    %276 = vdwg.mxu0
    %278 = vrot.lane.b32.xlu0 %v159, 96
    %v279 = vpop.permute.xlu0 %278
    %281 = vrot.lane.b32.xlu0 %v160, 96
    %v282 = vpop.permute.xlu0 %281
    %v284 = vsel %vm71, %v279, 0
    %v287 = vsel %vm71, %v282, 0
    %289 = vmatprep.subr.bf16.mxu0 0
    %290 = vmatpush1.bf16.xpose.msra.mxu0 %v287
    %291 = vmatprep.subr.bf16.mxu0 0
    %292 = vmatpush1.bf16.xpose.msra.mxu0 0
    %293 = vmatprep.subr.bf16.mxu0 0
    %294 = vmatpush1.bf16.xpose.msra.mxu0 0
    %295 = vmatprep.subr.bf16.mxu0 0
    %296 = vmatpush1.bf16.xpose.msra.mxu0 0
    %297 = vmatprep.subr.bf16.mxu0 0
    %298 = vmatpush1.bf16.xpose.msra.mxu0 0
    %299 = vmatprep.subr.bf16.mxu0 0
    %300 = vmatpush1.bf16.xpose.msra.mxu0 0
    %301 = vmatprep.subr.bf16.mxu0 0
    %302 = vmatpush1.bf16.xpose.msra.mxu0 0
    %303 = vmatprep.subr.bf16.mxu0 0
    %304 = vmatpush1.bf16.xpose.msra.mxu0 0
    %305 = vmatprep.subr.bf16.mxu0 0
    %306 = vmatpush1.bf16.xpose.msra.mxu0 0
    %307 = vmatprep.subr.bf16.mxu0 0
    %308 = vmatpush1.bf16.xpose.msra.mxu0 0
    %309 = vmatprep.subr.bf16.mxu0 0
    %310 = vmatpush1.bf16.xpose.msra.mxu0 0
    %311 = vmatprep.subr.bf16.mxu0 0
    %312 = vmatpush1.bf16.xpose.msra.mxu0 0
    %313 = vmatprep.subr.bf16.mxu0 0
    %314 = vmatpush1.bf16.xpose.msra.mxu0 0
    %315 = vmatprep.subr.bf16.mxu0 0
    %316 = vmatpush1.bf16.xpose.msra.mxu0 0
    %317 = vmatprep.subr.bf16.mxu0 0
    %318 = vmatpush1.bf16.xpose.msra.mxu0 0
    %319 = vmatprep.subr.bf16.mxu0 0
    %320 = vmatpush1.bf16.xpose.msra.mxu0 0
    %321 = vmatprep.mubr.bf16.mxu0 0
    %322 = vmatmul.mubr.bf16.gmra.mrb[0].mxu0 %v284
    %v323 = vpop.f32.mrb[0].mxu0
    %v324 = vadd.f32 %v28, %v323
    %v325 = vpop.f32.mrb[0].mxu0
    %v326 = vpop.f32.mrb[0].mxu0
    %v327 = vadd.f32 %v29, %v326
    %v328 = vpop.f32.mrb[0].mxu0
    %329 = vdwg.mxu0
    %v330 = vsel %vm209, %v324, -inf
    %331 = vmax.xlane.f32.xlu0 %v330
    %v332 = vpop.xlane.xlu0 %331
    %v333 = vsel %vm209, %v327, -inf
    %334 = vmax.xlane.f32.xlu0 %v333
    %v335 = vpop.xlane.xlu0 %334
    %v336 = vsub.f32 %v324, %v332
    %v337 = vsub.f32 %v327, %v335
    %v338 = vmul.f32 %v336, 1.442695
    %v339 = vpow.pop %v338
    %v340 = vmul.f32 %v337, 1.442695
    %v341 = vpow.pop %v340
    %v342 = vsel %vm209, %v339, 0.0
    %343 = vadd.xlane.f32.xlu0 %v342
    %v344 = vpop.xlane.xlu0 %343
    %v345 = vsel %vm209, %v341, 0.0
    %346 = vadd.xlane.f32.xlu0 %v345
    %v347 = vpop.xlane.xlu0 %346
    %v348 = vrcp.pop %v344
    %v349 = vrcp.pop %v347
    %v350 = vmul.f32 %v339, %v348
    %v351 = vmul.f32 %v341, %v349
    %v352 = vpack.c.bf16 %v351, %v350
    %354 = vrot.lane.b32.xlu0 %v161, 96
    %v355 = vpop.permute.xlu0 %354
    %v358 = vsel %vm209, %v352, 0
    %360 = vmatprep.subr.bf16.mxu0 0
    %361 = vmatpush1.bf16.msra.mxu0 %v355
    %362 = vmatprep.subr.bf16.mxu0 0
    %363 = vmatpush1.bf16.msra.mxu0 0
    %364 = vmatprep.subr.bf16.mxu0 0
    %365 = vmatpush1.bf16.msra.mxu0 0
    %366 = vmatprep.subr.bf16.mxu0 0
    %367 = vmatpush1.bf16.msra.mxu0 0
    %368 = vmatprep.subr.bf16.mxu0 0
    %369 = vmatpush1.bf16.msra.mxu0 0
    %370 = vmatprep.subr.bf16.mxu0 0
    %371 = vmatpush1.bf16.msra.mxu0 0
    %372 = vmatprep.subr.bf16.mxu0 0
    %373 = vmatpush1.bf16.msra.mxu0 0
    %374 = vmatprep.subr.bf16.mxu0 0
    %375 = vmatpush1.bf16.msra.mxu0 0
    %376 = vmatprep.subr.bf16.mxu0 0
    %377 = vmatpush1.bf16.msra.mxu0 0
    %378 = vmatprep.subr.bf16.mxu0 0
    %379 = vmatpush1.bf16.msra.mxu0 0
    %380 = vmatprep.subr.bf16.mxu0 0
    %381 = vmatpush1.bf16.msra.mxu0 0
    %382 = vmatprep.subr.bf16.mxu0 0
    %383 = vmatpush1.bf16.msra.mxu0 0
    %384 = vmatprep.subr.bf16.mxu0 0
    %385 = vmatpush1.bf16.msra.mxu0 0
    %386 = vmatprep.subr.bf16.mxu0 0
    %387 = vmatpush1.bf16.msra.mxu0 0
    %388 = vmatprep.subr.bf16.mxu0 0
    %389 = vmatpush1.bf16.msra.mxu0 0
    %390 = vmatprep.subr.bf16.mxu0 0
    %391 = vmatpush1.bf16.msra.mxu0 0
    %392 = vmatprep.mubr.bf16.mxu0 0
    %393 = vmatmul.mubr.bf16.gmra.mrb[0].mxu0 %v358
    %v394 = vpop.f32.mrb[0].mxu0
    %v395 = vadd.f32 0.0, %v394
    %v396 = vpop.f32.mrb[0].mxu0
    %v397 = vpop.f32.mrb[0].mxu0
    %v398 = vadd.f32 0.0, %v397
    %v399 = vpop.f32.mrb[0].mxu0
    %400 = vdwg.mxu0
    %401 = vrot.lane.b32.xlu0 %v159, 64
    %v402 = vpop.permute.xlu0 %401
    %403 = vrot.lane.b32.xlu0 %v160, 64
    %v404 = vpop.permute.xlu0 %403
    %v406 = vsel %vm71, %v402, 0
    %v409 = vsel %vm71, %v404, 0
    %411 = vmatprep.subr.bf16.mxu0 0
    %412 = vmatpush1.bf16.xpose.msra.mxu0 %v409
    %413 = vmatprep.subr.bf16.mxu0 0
    %414 = vmatpush1.bf16.xpose.msra.mxu0 0
    %415 = vmatprep.subr.bf16.mxu0 0
    %416 = vmatpush1.bf16.xpose.msra.mxu0 0
    %417 = vmatprep.subr.bf16.mxu0 0
    %418 = vmatpush1.bf16.xpose.msra.mxu0 0
    %419 = vmatprep.subr.bf16.mxu0 0
    %420 = vmatpush1.bf16.xpose.msra.mxu0 0
    %421 = vmatprep.subr.bf16.mxu0 0
    %422 = vmatpush1.bf16.xpose.msra.mxu0 0
    %423 = vmatprep.subr.bf16.mxu0 0
    %424 = vmatpush1.bf16.xpose.msra.mxu0 0
    %425 = vmatprep.subr.bf16.mxu0 0
    %426 = vmatpush1.bf16.xpose.msra.mxu0 0
    %427 = vmatprep.subr.bf16.mxu0 0
    %428 = vmatpush1.bf16.xpose.msra.mxu0 0
    %429 = vmatprep.subr.bf16.mxu0 0
    %430 = vmatpush1.bf16.xpose.msra.mxu0 0
    %431 = vmatprep.subr.bf16.mxu0 0
    %432 = vmatpush1.bf16.xpose.msra.mxu0 0
    %433 = vmatprep.subr.bf16.mxu0 0
    %434 = vmatpush1.bf16.xpose.msra.mxu0 0
    %435 = vmatprep.subr.bf16.mxu0 0
    %436 = vmatpush1.bf16.xpose.msra.mxu0 0
    %437 = vmatprep.subr.bf16.mxu0 0
    %438 = vmatpush1.bf16.xpose.msra.mxu0 0
    %439 = vmatprep.subr.bf16.mxu0 0
    %440 = vmatpush1.bf16.xpose.msra.mxu0 0
    %441 = vmatprep.subr.bf16.mxu0 0
    %442 = vmatpush1.bf16.xpose.msra.mxu0 0
    %443 = vmatprep.mubr.bf16.mxu0 0
    %444 = vmatmul.mubr.bf16.gmra.mrb[0].mxu0 %v406
    %v445 = vpop.f32.mrb[0].mxu0
    %v446 = vadd.f32 %v28, %v445
    %v447 = vpop.f32.mrb[0].mxu0
    %v448 = vpop.f32.mrb[0].mxu0
    %v449 = vadd.f32 %v29, %v448
    %v450 = vpop.f32.mrb[0].mxu0
    %451 = vdwg.mxu0
    %v452 = vsel %vm209, %v446, -inf
    %453 = vmax.xlane.f32.xlu0 %v452
    %v454 = vpop.xlane.xlu0 %453
    %v455 = vsel %vm209, %v449, -inf
    %456 = vmax.xlane.f32.xlu0 %v455
    %v457 = vpop.xlane.xlu0 %456
    %v458 = vsub.f32 %v446, %v454
    %v459 = vsub.f32 %v449, %v457
    %v460 = vmul.f32 %v458, 1.442695
    %v461 = vpow.pop %v460
    %v462 = vmul.f32 %v459, 1.442695
    %v463 = vpow.pop %v462
    %v464 = vsel %vm209, %v461, 0.0
    %465 = vadd.xlane.f32.xlu0 %v464
    %v466 = vpop.xlane.xlu0 %465
    %v467 = vsel %vm209, %v463, 0.0
    %468 = vadd.xlane.f32.xlu0 %v467
    %v469 = vpop.xlane.xlu0 %468
    %v470 = vrcp.pop %v466
    %v471 = vrcp.pop %v469
    %v472 = vmul.f32 %v461, %v470
    %v473 = vmul.f32 %v463, %v471
    %v474 = vpack.c.bf16 %v473, %v472
    %475 = vrot.lane.b32.xlu0 %v161, 64
    %v476 = vpop.permute.xlu0 %475
    %v479 = vsel %vm209, %v474, 0
    %481 = vmatprep.subr.bf16.mxu0 0
    %482 = vmatpush1.bf16.msra.mxu0 %v476
    %483 = vmatprep.subr.bf16.mxu0 0
    %484 = vmatpush1.bf16.msra.mxu0 0
    %485 = vmatprep.subr.bf16.mxu0 0
    %486 = vmatpush1.bf16.msra.mxu0 0
    %487 = vmatprep.subr.bf16.mxu0 0
    %488 = vmatpush1.bf16.msra.mxu0 0
    %489 = vmatprep.subr.bf16.mxu0 0
    %490 = vmatpush1.bf16.msra.mxu0 0
    %491 = vmatprep.subr.bf16.mxu0 0
    %492 = vmatpush1.bf16.msra.mxu0 0
    %493 = vmatprep.subr.bf16.mxu0 0
    %494 = vmatpush1.bf16.msra.mxu0 0
    %495 = vmatprep.subr.bf16.mxu0 0
    %496 = vmatpush1.bf16.msra.mxu0 0
    %497 = vmatprep.subr.bf16.mxu0 0
    %498 = vmatpush1.bf16.msra.mxu0 0
    %499 = vmatprep.subr.bf16.mxu0 0
    %500 = vmatpush1.bf16.msra.mxu0 0
    %501 = vmatprep.subr.bf16.mxu0 0
    %502 = vmatpush1.bf16.msra.mxu0 0
    %503 = vmatprep.subr.bf16.mxu0 0
    %504 = vmatpush1.bf16.msra.mxu0 0
    %505 = vmatprep.subr.bf16.mxu0 0
    %506 = vmatpush1.bf16.msra.mxu0 0
    %507 = vmatprep.subr.bf16.mxu0 0
    %508 = vmatpush1.bf16.msra.mxu0 0
    %509 = vmatprep.subr.bf16.mxu0 0
    %510 = vmatpush1.bf16.msra.mxu0 0
    %511 = vmatprep.subr.bf16.mxu0 0
    %512 = vmatpush1.bf16.msra.mxu0 0
    %513 = vmatprep.mubr.bf16.mxu0 0
    %514 = vmatmul.mubr.bf16.gmra.mrb[0].mxu0 %v479
    %v515 = vpop.f32.mrb[0].mxu0
    %v516 = vadd.f32 0.0, %v515
    %v517 = vpop.f32.mrb[0].mxu0
    %v518 = vpop.f32.mrb[0].mxu0
    %v519 = vadd.f32 0.0, %v518
    %v520 = vpop.f32.mrb[0].mxu0
    %521 = vdwg.mxu0
    %522 = vrot.lane.b32.xlu0 %v159, 32
    %v523 = vpop.permute.xlu0 %522
    %524 = vrot.lane.b32.xlu0 %v160, 32
    %v525 = vpop.permute.xlu0 %524
    %v527 = vsel %vm71, %v523, 0
    %v530 = vsel %vm71, %v525, 0
    %532 = vmatprep.subr.bf16.mxu0 0
    %533 = vmatpush1.bf16.xpose.msra.mxu0 %v530
    %534 = vmatprep.subr.bf16.mxu0 0
    %535 = vmatpush1.bf16.xpose.msra.mxu0 0
    %536 = vmatprep.subr.bf16.mxu0 0
    %537 = vmatpush1.bf16.xpose.msra.mxu0 0
    %538 = vmatprep.subr.bf16.mxu0 0
    %539 = vmatpush1.bf16.xpose.msra.mxu0 0
    %540 = vmatprep.subr.bf16.mxu0 0
    %541 = vmatpush1.bf16.xpose.msra.mxu0 0
    %542 = vmatprep.subr.bf16.mxu0 0
    %543 = vmatpush1.bf16.xpose.msra.mxu0 0
    %544 = vmatprep.subr.bf16.mxu0 0
    %545 = vmatpush1.bf16.xpose.msra.mxu0 0
    %546 = vmatprep.subr.bf16.mxu0 0
    %547 = vmatpush1.bf16.xpose.msra.mxu0 0
    %548 = vmatprep.subr.bf16.mxu0 0
    %549 = vmatpush1.bf16.xpose.msra.mxu0 0
    %550 = vmatprep.subr.bf16.mxu0 0
    %551 = vmatpush1.bf16.xpose.msra.mxu0 0
    %552 = vmatprep.subr.bf16.mxu0 0
    %553 = vmatpush1.bf16.xpose.msra.mxu0 0
    %554 = vmatprep.subr.bf16.mxu0 0
    %555 = vmatpush1.bf16.xpose.msra.mxu0 0
    %556 = vmatprep.subr.bf16.mxu0 0
    %557 = vmatpush1.bf16.xpose.msra.mxu0 0
    %558 = vmatprep.subr.bf16.mxu0 0
    %559 = vmatpush1.bf16.xpose.msra.mxu0 0
    %560 = vmatprep.subr.bf16.mxu0 0
    %561 = vmatpush1.bf16.xpose.msra.mxu0 0
    %562 = vmatprep.subr.bf16.mxu0 0
    %563 = vmatpush1.bf16.xpose.msra.mxu0 0
    %564 = vmatprep.mubr.bf16.mxu0 0
    %565 = vmatmul.mubr.bf16.gmra.mrb[0].mxu0 %v527
    %v566 = vpop.f32.mrb[0].mxu0
    %v567 = vadd.f32 %v28, %v566
    %v568 = vpop.f32.mrb[0].mxu0
    %v569 = vpop.f32.mrb[0].mxu0
    %v570 = vadd.f32 %v29, %v569
    %v571 = vpop.f32.mrb[0].mxu0
    %572 = vdwg.mxu0
    %v573 = vsel %vm209, %v567, -inf
    %574 = vmax.xlane.f32.xlu0 %v573
    %v575 = vpop.xlane.xlu0 %574
    %v576 = vsel %vm209, %v570, -inf
    %577 = vmax.xlane.f32.xlu0 %v576
    %v578 = vpop.xlane.xlu0 %577
    %v579 = vsub.f32 %v567, %v575
    %v580 = vsub.f32 %v570, %v578
    %v581 = vmul.f32 %v579, 1.442695
    %v582 = vpow.pop %v581
    %v583 = vmul.f32 %v580, 1.442695
    %v584 = vpow.pop %v583
    %v585 = vsel %vm209, %v582, 0.0
    %586 = vadd.xlane.f32.xlu0 %v585
    %v587 = vpop.xlane.xlu0 %586
    %v588 = vsel %vm209, %v584, 0.0
    %589 = vadd.xlane.f32.xlu0 %v588
    %v590 = vpop.xlane.xlu0 %589
    %v591 = vrcp.pop %v587
    %v592 = vrcp.pop %v590
    %v593 = vmul.f32 %v582, %v591
    %v594 = vmul.f32 %v584, %v592
    %v595 = vpack.c.bf16 %v594, %v593
    %596 = vrot.lane.b32.xlu0 %v161, 32
    %v597 = vpop.permute.xlu0 %596
    %v600 = vsel %vm209, %v595, 0
    %602 = vmatprep.subr.bf16.mxu0 0
    %603 = vmatpush1.bf16.msra.mxu0 %v597
    %604 = vmatprep.subr.bf16.mxu0 0
    %605 = vmatpush1.bf16.msra.mxu0 0
    %606 = vmatprep.subr.bf16.mxu0 0
    %607 = vmatpush1.bf16.msra.mxu0 0
    %608 = vmatprep.subr.bf16.mxu0 0
    %609 = vmatpush1.bf16.msra.mxu0 0
    %610 = vmatprep.subr.bf16.mxu0 0
    %611 = vmatpush1.bf16.msra.mxu0 0
    %612 = vmatprep.subr.bf16.mxu0 0
    %613 = vmatpush1.bf16.msra.mxu0 0
    %614 = vmatprep.subr.bf16.mxu0 0
    %615 = vmatpush1.bf16.msra.mxu0 0
    %616 = vmatprep.subr.bf16.mxu0 0
    %617 = vmatpush1.bf16.msra.mxu0 0
    %618 = vmatprep.subr.bf16.mxu0 0
    %619 = vmatpush1.bf16.msra.mxu0 0
    %620 = vmatprep.subr.bf16.mxu0 0
    %621 = vmatpush1.bf16.msra.mxu0 0
    %622 = vmatprep.subr.bf16.mxu0 0
    %623 = vmatpush1.bf16.msra.mxu0 0
    %624 = vmatprep.subr.bf16.mxu0 0
    %625 = vmatpush1.bf16.msra.mxu0 0
    %626 = vmatprep.subr.bf16.mxu0 0
    %627 = vmatpush1.bf16.msra.mxu0 0
    %628 = vmatprep.subr.bf16.mxu0 0
    %629 = vmatpush1.bf16.msra.mxu0 0
    %630 = vmatprep.subr.bf16.mxu0 0
    %631 = vmatpush1.bf16.msra.mxu0 0
    %632 = vmatprep.subr.bf16.mxu0 0
    %633 = vmatpush1.bf16.msra.mxu0 0
    %634 = vmatprep.mubr.bf16.mxu0 0
    %635 = vmatmul.mubr.bf16.gmra.mrb[0].mxu0 %v600
    %v636 = vpop.f32.mrb[0].mxu0
    %v637 = vadd.f32 0.0, %v636
    %v638 = vpop.f32.mrb[0].mxu0
    %v639 = vpop.f32.mrb[0].mxu0
    %v640 = vadd.f32 0.0, %v639
    %v641 = vpop.f32.mrb[0].mxu0
    %642 = vdwg.mxu0
    %645 = vrot.lane.b32.xlu0 %v395, 32
    %v646 = vpop.permute.xlu0 %645
    %647 = vrot.lane.b32.xlu0 %v398, 32
    %v648 = vpop.permute.xlu0 %647
    %653 = vrot.lane.b32.xlu0 %v516, 64
    %v654 = vpop.permute.xlu0 %653
    %655 = vrot.lane.b32.xlu0 %v519, 64
    %v656 = vpop.permute.xlu0 %655
    %661 = vrot.lane.b32.xlu0 %v637, 96
    %v662 = vpop.permute.xlu0 %661
    %663 = vrot.lane.b32.xlu0 %v640, 96
    %v664 = vpop.permute.xlu0 %663
    %v667 = vsel %vm71, %v271, %v646
    %v668 = vsel %vm71, %v274, %v648
    %vm669 = vcmask 523264
    %v670 = vsel %vm669, %v667, %v654
    %v671 = vsel %vm669, %v668, %v656
    %vm672 = vcmask 785408
    %v673 = vsel %vm672, %v670, %v662
    %v674 = vsel %vm672, %v671, %v664
    %v675 = vpack.c.bf16 %v674, %v673
    %v676 = vld [vmem:[%s2] sm:$0xf]
    %v677 = vld [vmem:[%s2 + $0x4] sm:$0xf]
    %v678 = vld [vmem:[%s2 + $0x8] sm:$0xf]
    %v679 = vld [vmem:[%s2 + $0xc] sm:$0xf]
    %v680 = vld [vmem:[%s2 + $0x10] sm:$0xf]
    %v681 = vld [vmem:[%s2 + $0x14] sm:$0xf]
    %v682 = vld [vmem:[%s2 + $0x18] sm:$0xf]
    %v683 = vld [vmem:[%s2 + $0x1c] sm:$0xf]
    %v684 = vld [vmem:[%s2 + $0x20] sm:$0xf]
    %v685 = vld [vmem:[%s2 + $0x24] sm:$0xf]
    %v686 = vld [vmem:[%s2 + $0x28] sm:$0xf]
    %v687 = vld [vmem:[%s2 + $0x2c] sm:$0xf]
    %v688 = vld [vmem:[%s2 + $0x30] sm:$0xf]
    %v689 = vld [vmem:[%s2 + $0x34] sm:$0xf]
    %v690 = vld [vmem:[%s2 + $0x38] sm:$0xf]
    %v691 = vld [vmem:[%s2 + $0x3c] sm:$0xf]
    %v692 = vlaneseq
    %v693 = vshrl.u32 %v692, 7
    %v694 = vsub.s32 0, %v693
    %v695 = vrot.slane %v27, %v694
    %v712 = vunpack.c.l.b16 %v676
    %v713 = vunpack.c.l.b16 %v677
    %v714 = vunpack.c.l.b16 %v678
    %v715 = vunpack.c.l.b16 %v679
    %v716 = vunpack.c.l.b16 %v680
    %v717 = vunpack.c.l.b16 %v681
    %v718 = vunpack.c.l.b16 %v682
    %v719 = vunpack.c.l.b16 %v683
    %v720 = vunpack.c.l.b16 %v684
    %v721 = vunpack.c.l.b16 %v685
    %v722 = vunpack.c.l.b16 %v686
    %v723 = vunpack.c.l.b16 %v687
    %v724 = vunpack.c.l.b16 %v688
    %v725 = vunpack.c.l.b16 %v689
    %v726 = vunpack.c.l.b16 %v690
    %v727 = vunpack.c.l.b16 %v691
    %v728 = vpack.c.b16 %v713, %v712
    %v729 = vpack.c.b16 %v715, %v714
    %v730 = vpack.c.b16 %v717, %v716
    %v731 = vpack.c.b16 %v719, %v718
    %v732 = vpack.c.b16 %v721, %v720
    %v733 = vpack.c.b16 %v723, %v722
    %v734 = vpack.c.b16 %v725, %v724
    %v735 = vpack.c.b16 %v727, %v726
    %744 = vmatprep.subr.bf16.mxu0 0
    %745 = vmatpush1.bf16.msra.mxu0 %v728
    %746 = vmatprep.subr.bf16.mxu0 0
    %747 = vmatpush1.bf16.msra.mxu0 %v729
    %748 = vmatprep.subr.bf16.mxu0 0
    %749 = vmatpush1.bf16.msra.mxu0 %v730
    %750 = vmatprep.subr.bf16.mxu0 0
    %751 = vmatpush1.bf16.msra.mxu0 %v731
    %752 = vmatprep.subr.bf16.mxu0 0
    %753 = vmatpush1.bf16.msra.mxu0 %v732
    %754 = vmatprep.subr.bf16.mxu0 0
    %755 = vmatpush1.bf16.msra.mxu0 %v733
    %756 = vmatprep.subr.bf16.mxu0 0
    %757 = vmatpush1.bf16.msra.mxu0 %v734
    %758 = vmatprep.subr.bf16.mxu0 0
    %759 = vmatpush1.bf16.msra.mxu0 %v735
    %760 = vmatprep.subr.bf16.mxu0 0
    %761 = vmatpush1.bf16.msra.mxu0 0
    %762 = vmatprep.subr.bf16.mxu0 0
    %763 = vmatpush1.bf16.msra.mxu0 0
    %764 = vmatprep.subr.bf16.mxu0 0
    %765 = vmatpush1.bf16.msra.mxu0 0
    %766 = vmatprep.subr.bf16.mxu0 0
    %767 = vmatpush1.bf16.msra.mxu0 0
    %768 = vmatprep.subr.bf16.mxu0 0
    %769 = vmatpush1.bf16.msra.mxu0 0
    %770 = vmatprep.subr.bf16.mxu0 0
    %771 = vmatpush1.bf16.msra.mxu0 0
    %772 = vmatprep.subr.bf16.mxu0 0
    %773 = vmatpush1.bf16.msra.mxu0 0
    %774 = vmatprep.subr.bf16.mxu0 0
    %775 = vmatpush1.bf16.msra.mxu0 0
    %776 = vmatprep.mubr.bf16.mxu0 0
    %777 = vmatmul.mubr.bf16.gmra.mrb[0].mxu0 %v675
    %v778 = vpop.f32.mrb[0].mxu0
    %v779 = vadd.f32 %v695, %v778
    %v780 = vpop.f32.mrb[0].mxu0
    %v781 = vpop.f32.mrb[0].mxu0
    %v782 = vadd.f32 %v695, %v781
    %v783 = vpop.f32.mrb[0].mxu0
    %784 = vdwg.mxu0
    %v785 = vadd.f32 %v779, %v25
    %v786 = vadd.f32 %v782, %v26
    %v787 = vsel %vm71, %v785, 0.0
    %788 = vadd.xlane.f32.xlu0 %v787
    %v789 = vpop.xlane.xlu0 %788
    %v790 = vsel %vm71, %v786, 0.0
    %791 = vadd.xlane.f32.xlu0 %v790
    %v792 = vpop.xlane.xlu0 %791
    %v793 = vrcp.pop 32.0
    %v794 = vmul.f32 %v789, %v793
    %v795 = vmul.f32 %v792, %v793
    %v796 = vsub.f32 %v785, %v794
    %v797 = vsub.f32 %v786, %v795
    %v798 = vmul.f32 %v796, %v796
    %v799 = vmul.f32 %v797, %v797
    %v800 = vsel %vm71, %v798, 0.0
    %801 = vadd.xlane.f32.xlu0 %v800
    %v802 = vpop.xlane.xlu0 %801
    %v803 = vsel %vm71, %v799, 0.0
    %804 = vadd.xlane.f32.xlu0 %v803
    %v805 = vpop.xlane.xlu0 %804
    %v806 = vmul.f32 %v802, %v793
    %v807 = vmul.f32 %v805, %v793
    %v808 = vadd.f32 %v806, 1e-05
    %v809 = vadd.f32 %v807, 1e-05
    %v810 = vrsqrt.pop %v808
    %v811 = vrsqrt.pop %v809
    %v812 = vmul.f32 %v796, %v810
    %v813 = vmul.f32 %v797, %v811
    %v814 = vlaneseq
    %v815 = vshrl.u32 %v814, 7
    %v816 = vsub.s32 1, %v815
    %v817 = vrot.slane %v27, %v816
    %v818 = vmul.f32 %v812, %v817
    %v819 = vmul.f32 %v813, %v817
    %v820 = vlaneseq
    %v821 = vshrl.u32 %v820, 7
    %v822 = vsub.s32 2, %v821
    %v823 = vrot.slane %v27, %v822
    %v824 = vadd.f32 %v818, %v823
    %v825 = vadd.f32 %v819, %v823
    %v826 = vpack.c.bf16 %v825, %v824
    %v827 = vld [vmem:[%s3] sm:$0xf]
    %v828 = vld [vmem:[%s3 + $0x4] sm:$0xf]
    %v829 = vld [vmem:[%s3 + $0x8] sm:$0xf]
    %v830 = vld [vmem:[%s3 + $0xc] sm:$0xf]
    %v831 = vlaneseq
    %v832 = vshrl.u32 %v831, 7
    %v833 = vsub.s32 3, %v832
    %v834 = vrot.slane %v27, %v833
    %v839 = vunpack.c.l.b16 %v827
    %v840 = vunpack.c.l.b16 %v828
    %v841 = vunpack.c.l.b16 %v829
    %v842 = vunpack.c.l.b16 %v830
    %v843 = vpack.c.b16 %v840, %v839
    %v844 = vpack.c.b16 %v842, %v841
    %v848 = vsel %vm71, %v826, 0
    %850 = vmatprep.subr.bf16.mxu0 0
    %851 = vmatpush1.bf16.msra.mxu0 %v843
    %852 = vmatprep.subr.bf16.mxu0 0
    %853 = vmatpush1.bf16.msra.mxu0 %v844
    %854 = vmatprep.subr.bf16.mxu0 0
    %855 = vmatpush1.bf16.msra.mxu0 0
    %856 = vmatprep.subr.bf16.mxu0 0
    %857 = vmatpush1.bf16.msra.mxu0 0
    %858 = vmatprep.subr.bf16.mxu0 0
    %859 = vmatpush1.bf16.msra.mxu0 0
    %860 = vmatprep.subr.bf16.mxu0 0
    %861 = vmatpush1.bf16.msra.mxu0 0
    %862 = vmatprep.subr.bf16.mxu0 0
    %863 = vmatpush1.bf16.msra.mxu0 0
    %864 = vmatprep.subr.bf16.mxu0 0
    %865 = vmatpush1.bf16.msra.mxu0 0
    %866 = vmatprep.subr.bf16.mxu0 0
    %867 = vmatpush1.bf16.msra.mxu0 0
    %868 = vmatprep.subr.bf16.mxu0 0
    %869 = vmatpush1.bf16.msra.mxu0 0
    %870 = vmatprep.subr.bf16.mxu0 0
    %871 = vmatpush1.bf16.msra.mxu0 0
    %872 = vmatprep.subr.bf16.mxu0 0
    %873 = vmatpush1.bf16.msra.mxu0 0
    %874 = vmatprep.subr.bf16.mxu0 0
    %875 = vmatpush1.bf16.msra.mxu0 0
    %876 = vmatprep.subr.bf16.mxu0 0
    %877 = vmatpush1.bf16.msra.mxu0 0
    %878 = vmatprep.subr.bf16.mxu0 0
    %879 = vmatpush1.bf16.msra.mxu0 0
    %880 = vmatprep.subr.bf16.mxu0 0
    %881 = vmatpush1.bf16.msra.mxu0 0
    %882 = vmatprep.mubr.bf16.mxu0 0
    %883 = vmatmul.mubr.bf16.gmra.mrb[0].mxu0 %v848
    %v884 = vpop.f32.mrb[0].mxu0
    %v885 = vadd.f32 %v834, %v884
    %v886 = vpop.f32.mrb[0].mxu0
    %v887 = vpop.f32.mrb[0].mxu0
    %v888 = vadd.f32 %v834, %v887
    %v889 = vpop.f32.mrb[0].mxu0
    %890 = vdwg.mxu0
    %v891 = vmax.f32 %v885, 0.0
    %v892 = vmax.f32 %v888, 0.0
    %v893 = vpack.c.bf16 %v892, %v891
    %v894 = vld [vmem:[%s4] sm:$0xf]
    %v895 = vld [vmem:[%s4 + $0x4] sm:$0xf]
    %v896 = vld [vmem:[%s4 + $0x8] sm:$0xf]
    %v897 = vld [vmem:[%s4 + $0xc] sm:$0xf]
    %v898 = vld [vmem:[%s4 + $0x10] sm:$0xf]
    %v899 = vld [vmem:[%s4 + $0x14] sm:$0xf]
    %v900 = vld [vmem:[%s4 + $0x18] sm:$0xf]
    %v901 = vld [vmem:[%s4 + $0x1c] sm:$0xf]
    %v902 = vld [vmem:[%s4 + $0x20] sm:$0xf]
    %v903 = vld [vmem:[%s4 + $0x24] sm:$0xf]
    %v904 = vld [vmem:[%s4 + $0x28] sm:$0xf]
    %v905 = vld [vmem:[%s4 + $0x2c] sm:$0xf]
    %v906 = vld [vmem:[%s4 + $0x30] sm:$0xf]
    %v907 = vld [vmem:[%s4 + $0x34] sm:$0xf]
    %v908 = vld [vmem:[%s4 + $0x38] sm:$0xf]
    %v909 = vld [vmem:[%s4 + $0x3c] sm:$0xf]
    %v910 = vlaneseq
    %v911 = vshrl.u32 %v910, 7
    %v912 = vsub.s32 4, %v911
    %v913 = vrot.slane %v27, %v912
    %v930 = vunpack.c.l.b16 %v894
    %v931 = vunpack.c.l.b16 %v895
    %v932 = vunpack.c.l.b16 %v896
    %v933 = vunpack.c.l.b16 %v897
    %v934 = vunpack.c.l.b16 %v898
    %v935 = vunpack.c.l.b16 %v899
    %v936 = vunpack.c.l.b16 %v900
    %v937 = vunpack.c.l.b16 %v901
    %v938 = vunpack.c.l.b16 %v902
    %v939 = vunpack.c.l.b16 %v903
    %v940 = vunpack.c.l.b16 %v904
    %v941 = vunpack.c.l.b16 %v905
    %v942 = vunpack.c.l.b16 %v906
    %v943 = vunpack.c.l.b16 %v907
    %v944 = vunpack.c.l.b16 %v908
    %v945 = vunpack.c.l.b16 %v909
    %v946 = vpack.c.b16 %v931, %v930
    %v947 = vpack.c.b16 %v933, %v932
    %v948 = vpack.c.b16 %v935, %v934
    %v949 = vpack.c.b16 %v937, %v936
    %v950 = vpack.c.b16 %v939, %v938
    %v951 = vpack.c.b16 %v941, %v940
    %v952 = vpack.c.b16 %v943, %v942
    %v953 = vpack.c.b16 %v945, %v944
    %962 = vmatprep.subr.bf16.mxu0 0
    %963 = vmatpush1.bf16.msra.mxu0 %v946
    %964 = vmatprep.subr.bf16.mxu0 0
    %965 = vmatpush1.bf16.msra.mxu0 %v947
    %966 = vmatprep.subr.bf16.mxu0 0
    %967 = vmatpush1.bf16.msra.mxu0 %v948
    %968 = vmatprep.subr.bf16.mxu0 0
    %969 = vmatpush1.bf16.msra.mxu0 %v949
    %970 = vmatprep.subr.bf16.mxu0 0
    %971 = vmatpush1.bf16.msra.mxu0 %v950
    %972 = vmatprep.subr.bf16.mxu0 0
    %973 = vmatpush1.bf16.msra.mxu0 %v951
    %974 = vmatprep.subr.bf16.mxu0 0
    %975 = vmatpush1.bf16.msra.mxu0 %v952
    %976 = vmatprep.subr.bf16.mxu0 0
    %977 = vmatpush1.bf16.msra.mxu0 %v953
    %978 = vmatprep.subr.bf16.mxu0 0
    %979 = vmatpush1.bf16.msra.mxu0 0
    %980 = vmatprep.subr.bf16.mxu0 0
    %981 = vmatpush1.bf16.msra.mxu0 0
    %982 = vmatprep.subr.bf16.mxu0 0
    %983 = vmatpush1.bf16.msra.mxu0 0
    %984 = vmatprep.subr.bf16.mxu0 0
    %985 = vmatpush1.bf16.msra.mxu0 0
    %986 = vmatprep.subr.bf16.mxu0 0
    %987 = vmatpush1.bf16.msra.mxu0 0
    %988 = vmatprep.subr.bf16.mxu0 0
    %989 = vmatpush1.bf16.msra.mxu0 0
    %990 = vmatprep.subr.bf16.mxu0 0
    %991 = vmatpush1.bf16.msra.mxu0 0
    %992 = vmatprep.subr.bf16.mxu0 0
    %993 = vmatpush1.bf16.msra.mxu0 0
    %994 = vmatprep.mubr.bf16.mxu0 0
    %995 = vmatmul.mubr.bf16.gmra.mrb[0].mxu0 %v893
    %v996 = vpop.f32.mrb[0].mxu0
    %v997 = vadd.f32 %v913, %v996
    %v998 = vpop.f32.mrb[0].mxu0
    %v999 = vpop.f32.mrb[0].mxu0
    %v1000 = vadd.f32 %v913, %v999
    %v1001 = vpop.f32.mrb[0].mxu0
    %1002 = vdwg.mxu0
    %v1003 = vadd.f32 %v997, %v824
    %v1004 = vadd.f32 %v1000, %v825
    %v1005 = vsel %vm71, %v1003, 0.0
    %1006 = vadd.xlane.f32.xlu0 %v1005
    %v1007 = vpop.xlane.xlu0 %1006
    %v1008 = vsel %vm71, %v1004, 0.0
    %1009 = vadd.xlane.f32.xlu0 %v1008
    %v1010 = vpop.xlane.xlu0 %1009
    %v1011 = vmul.f32 %v1007, %v793
    %v1012 = vmul.f32 %v1010, %v793
    %v1013 = vsub.f32 %v1003, %v1011
    %v1014 = vsub.f32 %v1004, %v1012
    %v1015 = vmul.f32 %v1013, %v1013
    %v1016 = vmul.f32 %v1014, %v1014
    %v1017 = vsel %vm71, %v1015, 0.0
    %1018 = vadd.xlane.f32.xlu0 %v1017
    %v1019 = vpop.xlane.xlu0 %1018
    %v1020 = vsel %vm71, %v1016, 0.0
    %1021 = vadd.xlane.f32.xlu0 %v1020
    %v1022 = vpop.xlane.xlu0 %1021
    %v1023 = vmul.f32 %v1019, %v793
    %v1024 = vmul.f32 %v1022, %v793
    %v1025 = vadd.f32 %v1023, 1e-05
    %v1026 = vadd.f32 %v1024, 1e-05
    %v1027 = vrsqrt.pop %v1025
    %v1028 = vrsqrt.pop %v1026
    %v1029 = vmul.f32 %v1013, %v1027
    %v1030 = vmul.f32 %v1014, %v1028
    %v1031 = vlaneseq
    %v1032 = vshrl.u32 %v1031, 7
    %v1033 = vsub.s32 5, %v1032
    %v1034 = vrot.slane %v27, %v1033
    %v1035 = vmul.f32 %v1029, %v1034
    %v1036 = vmul.f32 %v1030, %v1034
    %v1037 = vlaneseq
    %v1038 = vshrl.u32 %v1037, 7
    %v1039 = vsub.s32 6, %v1038
    %v1040 = vrot.slane %v27, %v1039
    %v1041 = vadd.f32 %v1035, %v1040
    %v1042 = vadd.f32 %v1036, %v1040
    %1043 = vst.msk [vmem:[#allocation2] sm:$0xff] %vm71, %v1041
    %1044 = vst.msk [vmem:[#allocation2 + $0x8] sm:$0xff] %vm71, %v1042
    // Predicated region
    $region26: #{transformer_block.1} parent=1 // pred_check
      _
    $region27: #{transformer_block.1} parent=1 // pred_check_branch
      %1046 = sbr.rel (0) target = $region29
    $region28: #{transformer_block.1} parent=1 // pred_region
      %s1048 = ssub.s32 256, 256
      %1049 = vsyncadd [#allocation3], %s1048
      %s1050 = sshll.u32 [#allocation2], 4
      %s1051 = int_to_ptr.vmem [resolvable:$true] %s1050
      %1056 = dma.vmem_to_hbm [thread:$0]  %s1051, 256, %s6, [#allocation3], 128, 128, 8
    $region29: #{transformer_block.1} parent=1 // pred_fallthru
      _
    // Predicated region
    $region30: #{transformer_block.1} parent=1 // pred_check
      _
    $region31: #{transformer_block.1} parent=1 // pred_check_branch
      %1058 = sbr.rel (0) target = $region33
    $region32: #{transformer_block.1} parent=1 // pred_region
      %1059 = dma.done [#allocation3], 256
    $region33: #{transformer_block.1} parent=1 // pred_fallthru
      _
    %1060 = vsyncpa [#allocation3], 1

</llo_original>
